<compile_context>
chip_gen: v6e
topology: v6e:2x2x1
jax: 0.10.0
libtpu: 0.0.40
codegen_flags: <defaults>
</compile_context>

<pallas_src>
import functools

import jax
import jax.numpy as jnp
from jax import lax
from jax.experimental import pallas as pl
from jax.experimental.pallas import tpu as pltpu


_VMEM_LIMIT_BYTES = 32 * 1024 * 1024    # > v5e 16 MiB scoped default, << v7x 64 MiB physical
_VMEM_BUDGET_BYTES = 20 * 1024 * 1024   # target double-buffered working set (v7x headroom)


# ----------------------------------------------------------------------------
# helpers
# ----------------------------------------------------------------------------
def _round_up(x: int, m: int) -> int:
    return ((x + m - 1) // m) * m


def _pick_tile(dim: int, quantum: int, max_tile: int):
    """Return (tile, padded_dim): tile multiple of `quantum`, padded_dim multiple of tile."""
    padded = _round_up(dim, quantum)
    if padded <= max_tile:
        return padded, padded
    tile = max(quantum, (max_tile // quantum) * quantum)
    return tile, _round_up(dim, tile)


def _pad_rows(a, rows: int):
    return a if a.shape[0] == rows else jnp.pad(a, ((0, rows - a.shape[0]), (0, 0)))


def _l2_normalize_rows(a):
    sq = jnp.sum(a * a, axis=1, keepdims=True)
    nz = sq > 0.0                                   # faiss.normalize_L2 leaves zero rows
    return a * jnp.where(nz, lax.rsqrt(jnp.where(nz, sq, 1.0)), 0.0)


# ----------------------------------------------------------------------------
# Kernel 1: faiss-style inner-product similarity.
#   Both operands pre-normalized, real/imag fused along the contraction dim (2F),
#   bf16 in / f32 MXU accumulation / bf16 out (lane-dense along N).
# ----------------------------------------------------------------------------
def _similarity_kernel(q_ref, d_t_ref, s_ref):
    dims = (((1,), (0,)), ((), ()))                 # contract 2F with dim 0 of (2F, tn)
    s = lax.dot_general(q_ref[...], d_t_ref[...], dims, preferred_element_type=jnp.float32)
    s_ref[...] = s.astype(jnp.bfloat16)


def similarity(q_n, d_n_t, *, tb, tn):
    b_pad, two_f = q_n.shape
    n_pad = d_n_t.shape[1]
    grid = (b_pad // tb, n_pad // tn)
    return pl.pallas_call(
        _similarity_kernel,
        out_shape=jax.ShapeDtypeStruct((b_pad, n_pad), jnp.bfloat16),
        grid=grid,
        in_specs=[
            pl.BlockSpec((tb, two_f), lambda bi, ni: (bi, 0)),
            pl.BlockSpec((two_f, tn), lambda bi, ni: (0, ni)),
        ],
        out_specs=pl.BlockSpec((tb, tn), lambda bi, ni: (bi, ni)),
        compiler_params=pltpu.CompilerParams(
            dimension_semantics=("parallel", "parallel"),
            vmem_limit_bytes=_VMEM_LIMIT_BYTES),
    )(q_n, d_n_t)


# ----------------------------------------------------------------------------
# Kernel 2: neighbor aggregation.
#   Weight tile W[r, c] = 1/K if global column c is one of query r's top-k indices,
#   built in-kernel from the blocked (tb, K) index input (no dense B x N scatter in HBM).
#   One bf16 MXU matmul W(tb,tn) @ feat(tn,3F) per step, accumulated over the N axis
#   into a single (tb, 3F) f32 scratch; finalize (circular mean + alpha blend) at the
#   last N step.  NOTE: init/finalize rely on the N axis being the innermost grid axis.
# ----------------------------------------------------------------------------
def _aggregate_kernel(alpha_ref, x_ref, idx_ref, feat_ref, out_ref, acc_ref, *, inv_k, f):
    ni = pl.program_id(1)
    tb = idx_ref.shape[0]
    k = idx_ref.shape[1]
    tn = feat_ref.shape[0]

    @pl.when(ni == 0)
    def _init():
        acc_ref[...] = jnp.zeros_like(acc_ref)

    # Rebuild the (tb, tn) top-k weight tile from the neighbor indices.
    col = ni * tn + lax.broadcasted_iota(jnp.int32, (tb, tn), 1)   # global column ids
    idx = idx_ref[...]                                             # (tb, K) int32
    hits = jnp.zeros((tb, tn), jnp.float32)
    for kk in range(k):                                            # K is small & static
        hits += (col == idx[:, kk:kk + 1]).astype(jnp.float32)
    w = (hits * inv_k).astype(jnp.bfloat16)

    dims = (((1,), (0,)), ((), ()))
    acc_ref[...] += lax.dot_general(w, feat_ref[...], dims,
                                    preferred_element_type=jnp.float32)

    @pl.when(ni == pl.num_programs(1) - 1)
    def _finalize():
        alpha = alpha_ref[0]
        acc = acc_ref[...]                                         # (tb, 3F) f32
        mean_rho = acc[:, :f]
        c = acc[:, f:2 * f]
        s = acc[:, 2 * f:]
        hsq = c * c + s * s
        hz = hsq > 0.0
        inv_h = jnp.where(hz, lax.rsqrt(jnp.where(hz, hsq, 1.0)), 0.0)
        cos_mphi = jnp.where(hz, c * inv_h, 1.0)                   # atan2(0, 0) == 0
        sin_mphi = s * inv_h
        agg_r = mean_rho * cos_mphi
        agg_i = mean_rho * sin_mphi
        x = x_ref[...]                                             # (tb, 2F) f32 [re | im]
        xr = x[:, :f]
        xi = x[:, f:]
        out_ref[...] = jnp.concatenate(
            [(1.0 - alpha) * xr + alpha * agg_r,
             (1.0 - alpha) * xi + alpha * agg_i], axis=1)


def aggregate(alpha, x_reim, nn_idx, feat, *, inv_k, f, tb, tn):
    b_pad = x_reim.shape[0]
    n_pad, three_f = feat.shape
    k = nn_idx.shape[1]
    alpha_arr = jnp.asarray(alpha, jnp.float32).reshape((1,))
    grid = (b_pad // tb, n_pad // tn)                              # N (reduction) axis last
    kern = functools.partial(_aggregate_kernel, inv_k=inv_k, f=f)
    return pl.pallas_call(
        kern,
        out_shape=jax.ShapeDtypeStruct((b_pad, 2 * f), jnp.float32),
        grid=grid,
        in_specs=[
            pl.BlockSpec(memory_space=pltpu.MemorySpace.SMEM),     # alpha scalar
            pl.BlockSpec((tb, 2 * f), lambda bi, ni: (bi, 0)),     # x [re | im] (blend input)
            pl.BlockSpec((tb, k), lambda bi, ni: (bi, 0)),         # top-k neighbor indices
            pl.BlockSpec((tn, three_f), lambda bi, ni: (ni, 0)),   # [rho | cos | sin] bf16
        ],
        out_specs=pl.BlockSpec((tb, 2 * f), lambda bi, ni: (bi, 0)),
        scratch_shapes=[pltpu.VMEM((tb, three_f), jnp.float32)],
        compiler_params=pltpu.CompilerParams(
            dimension_semantics=("parallel", "arbitrary"),
            vmem_limit_bytes=_VMEM_LIMIT_BYTES),
    )(alpha_arr, x_reim, nn_idx, feat)


# ----------------------------------------------------------------------------
# Module wrapper (glue: complex split, db concat, pad, normalize, top-k, slice).
# ----------------------------------------------------------------------------
class SparseRetriever:
    _MAX_TB = 512
    _MAX_TN = 2048

    def __init__(self, top_k: int = 32, init_alpha: float = 0.2, learnable_alpha: bool = True):
        self.top_k = top_k
        self.learnable_alpha = learnable_alpha
        self.alpha = jnp.float32(init_alpha)   # matches nn.Parameter(th.tensor(init_alpha))

    def _tiles(self, b_query: int, n_db: int, f: int, k: int):
        """Pick (tb, b_pad, tn, n_pad) from the total double-buffered VMEM footprint."""
        def fits(tb, tn):
            sim = 2 * (tb * 2 * f * 2 + 2 * f * tn * 2 + tb * tn * 2)          # bf16 q/db/out
            agg = 2 * (tb * 2 * f * 4 + tb * k * 4 + tn * 3 * f * 2 + tb * 2 * f * 4) \
                + tb * 3 * f * 4                                                # + f32 acc
            return max(sim, agg) <= _VMEM_BUDGET_BYTES

        tb_cap, tn_cap = self._MAX_TB, self._MAX_TN
        while tn_cap > 128 and not fits(tb_cap, tn_cap):
            tn_cap //= 2
        while tb_cap > 16 and not fits(tb_cap, tn_cap):
            tb_cap //= 2

        tb, b_pad = _pick_tile(b_query, 16, tb_cap)     # 16-sublane quantum (bf16 packing)
        tn, n_pad = _pick_tile(n_db, 128, tn_cap)
        # v7x megacore: expose >=2 parallel B blocks when the batch fits a single tile.
        if b_pad == tb and b_pad >= 32 and (b_pad // 2) % 16 == 0:
            tb = b_pad // 2
        return tb, b_pad, tn, n_pad

    def __call__(self, x_cmp, attention_tokens=None):
        if not jnp.iscomplexobj(x_cmp):
            raise RuntimeError("SparseRetriever expects complex input x_cmp")
        if attention_tokens is not None and not jnp.iscomplexobj(attention_tokens):
            raise RuntimeError("SparseRetriever expects complex input attention_tokens")
        b_query, f = x_cmp.shape
        if b_query == 0:
            return x_cmp

        x_r = jnp.real(x_cmp).astype(jnp.float32)
        x_i = jnp.imag(x_cmp).astype(jnp.float32)
        db_r, db_i = x_r, x_i
        if attention_tokens is not None and attention_tokens.shape[0] > 0:
            if attention_tokens.shape[1] != f:
                raise ValueError("Attention tokens feature dim must match x_cmp feature dim")
            db_r = jnp.concatenate([x_r, jnp.real(attention_tokens).astype(jnp.float32)], axis=0)
            db_i = jnp.concatenate([x_i, jnp.imag(attention_tokens).astype(jnp.float32)], axis=0)
        n_db = db_r.shape[0]
        if n_db == 0:
            return x_cmp
        actual_top_k = min(self.top_k, n_db)
        if actual_top_k == 0:
            return x_cmp

        tb, b_pad, tn, n_pad = self._tiles(b_query, n_db, f, actual_top_k)

        # --- similarity operands: fused [real | imag], L2-normalized ONCE, bf16 ---
        q = jnp.concatenate([x_r, x_i], axis=1)                      # (B, 2F) f32
        d = jnp.concatenate([db_r, db_i], axis=1)                    # (N, 2F) f32
        q_p = _pad_rows(q, b_pad)                                    # un-normalized copy reused below
        d_p = _pad_rows(d, n_pad)
        q_n = _l2_normalize_rows(q_p).astype(jnp.bfloat16)           # (B_pad, 2F)
        d_n_t = jnp.transpose(_l2_normalize_rows(d_p)).astype(jnp.bfloat16)   # (2F, N_pad)

        sim = similarity(q_n, d_n_t, tb=tb, tn=tn)                   # (B_pad, N_pad) bf16
        # Drop padded rows/columns BEFORE top-k: padded columns score exactly 0 and
        # could otherwise outrank genuinely negative similarities.
        sim = sim[:b_query, :n_db]

        # TODO(synk): top-k selection stays in plain JAX (lax.top_k over the full (B, N) row);
        # a per-tile partial-top-K epilogue inside the similarity kernel would shrink this
        # further but there is no clean single-pass Pallas selection primitive.
        _, nn_idx = jax.lax.top_k(sim, actual_top_k)                 # (B, K) int32
        nn_idx_p = jnp.pad(nn_idx.astype(jnp.int32), ((0, b_pad - b_query), (0, 0)))

        # --- aggregate features [rho | cosφ | sinφ] precomputed ONCE (trig-free, rsqrt) ---
        dbr_p = _pad_rows(db_r, n_pad)
        dbi_p = _pad_rows(db_i, n_pad)
        sq = dbr_p * dbr_p + dbi_p * dbi_p
        nz = sq > 0.0
        inv = jnp.where(nz, lax.rsqrt(jnp.where(nz, sq, 1.0)), 0.0)
        rho = sq * inv + 1e-7                                        # |z| + 1e-7
        cphi = jnp.where(nz, dbr_p * inv, 1.0)                       # angle(0) := 0 -> (1, 0)
        sphi = dbi_p * inv
        feat = jnp.concatenate([rho, cphi, sphi], axis=1).astype(jnp.bfloat16)   # (N_pad, 3F)

        # torch clamps alpha only when it is an nn.Parameter (learnable).
        alpha = jnp.clip(self.alpha, 0.0, 1.0) if self.learnable_alpha else jnp.float32(self.alpha)

        out = aggregate(alpha, q_p, nn_idx_p, feat,
                        inv_k=1.0 / actual_top_k, f=f, tb=tb, tn=tn)  # (B_pad, 2F) f32
        return jax.lax.complex(out[:b_query, :f], out[:b_query, f:])


# ----------------------------------------------------------------------------
# pure-jnp reference mirroring the torch forward (for the self-check)
# ----------------------------------------------------------------------------
def _reference(x_cmp, attention_tokens, top_k, alpha):
    db = x_cmp if attention_tokens is None else jnp.concatenate([x_cmp, attention_tokens], 0)
    q = jnp.concatenate([jnp.real(x_cmp), jnp.imag(x_cmp)], 1)
    d = jnp.concatenate([jnp.real(db), jnp.imag(db)], 1)
    qn = jnp.linalg.norm(q, axis=1, keepdims=True)
    dn = jnp.linalg.norm(d, axis=1, keepdims=True)
    sim = (q / jnp.where(qn > 0, qn, 1.0)) @ (d / jnp.where(dn > 0, dn, 1.0)).T
    k = min(top_k, db.shape[0])
    _, idx = jax.lax.top_k(sim, k)
    nbrs = db[idx]
    rho = jnp.abs(nbrs) + 1e-7
    phi = jnp.angle(nbrs)
    mean_rho = rho.mean(axis=1)
    mean_phi = jnp.arctan2(jnp.sin(phi).mean(axis=1), jnp.cos(phi).mean(axis=1))
    agg = mean_rho * jnp.exp(1j * mean_phi)
    a = jnp.clip(alpha, 0.0, 1.0)
    return (1.0 - a) * x_cmp + a * agg


if __name__ == "__main__":
    key = jax.random.PRNGKey(0)
    k1, k2, k3, k4 = jax.random.split(key, 4)
    B, F, N_ATT = 8, 32, 4          # small demo shapes: 8 queries, 32 features, 4 attention tokens
    x_cmp = (jax.random.normal(k1, (B, F), jnp.float32)
             + 1j * jax.random.normal(k2, (B, F), jnp.float32)).astype(jnp.complex64)
    att_tok = (jax.random.normal(k3, (N_ATT, F), jnp.float32)
               + 1j * jax.random.normal(k4, (N_ATT, F), jnp.float32)).astype(jnp.complex64)

    retriever = SparseRetriever(top_k=32, init_alpha=0.2, learnable_alpha=True)
    out = jax.block_until_ready(retriever(x_cmp, att_tok))

    assert out.shape == (B, F) and out.dtype == jnp.complex64
    assert bool(jnp.all(jnp.isfinite(jnp.real(out)))) and bool(jnp.all(jnp.isfinite(jnp.imag(out))))

    # Numerical self-check (top_k >= n_db at demo scale, so the bf16 similarity ranking
    # cannot change the neighbor set; loose tolerance covers bf16 feature/weight operands).
    ref = jax.block_until_ready(_reference(x_cmp, att_tok, retriever.top_k, retriever.alpha))
    assert bool(jnp.allclose(out, ref, atol=2e-2, rtol=2e-2)), "mismatch vs jnp reference"

    print("KERNEL_OK")
</pallas_src>

<mosaic_0001>
module attributes {stable_mosaic.version = 11 : i64} {
  func.func @_similarity_kernel(%arg0: i32, %arg1: i32, %arg2: memref<16x64xbf16, #tpu.memory_space<vmem>>, %arg3: memref<64x128xbf16, #tpu.memory_space<vmem>>, %arg4: memref<16x128xbf16, #tpu.memory_space<vmem>>) attributes {dimension_semantics = [#tpu.dimension_semantics<parallel>, #tpu.dimension_semantics<parallel>], iteration_bounds = array<i64: 1, 1>, scalar_prefetch = 0 : i64, scratch_operands = 0 : i64, tpu.core_type = #tpu.core_type<tc>, window_params = [{transform_indices = @transform_0, window_bounds = array<i64: 16, 64>}, {transform_indices = @transform_1, window_bounds = array<i64: 64, 128>}, {transform_indices = @transform_2, window_bounds = array<i64: 16, 128>}]} {
    %c0 = arith.constant 0 : index
    %c0_0 = arith.constant 0 : index
    %0 = vector.load %arg2[%c0, %c0_0] : memref<16x64xbf16, #tpu.memory_space<vmem>>, vector<16x64xbf16>
    %c0_1 = arith.constant 0 : index
    %c0_2 = arith.constant 0 : index
    %1 = vector.load %arg3[%c0_1, %c0_2] : memref<64x128xbf16, #tpu.memory_space<vmem>>, vector<64x128xbf16>
    %cst = arith.constant dense<0.000000e+00> : vector<16x128xf32>
    %2 = tpu.matmul %0, %1, %cst {dimension_numbers = #tpu.dot_dimension_numbers<[1], [0], [0], [1], [0, 0, 1, 1], [], []>} : vector<16x64xbf16>, vector<64x128xbf16>, vector<16x128xf32> -> vector<16x128xf32>
    %3 = arith.truncf %2 : vector<16x128xf32> to vector<16x128xbf16>
    %c0_3 = arith.constant 0 : index
    %c0_4 = arith.constant 0 : index
    %4 = vector.load %arg4[%c0_3, %c0_4] : memref<16x128xbf16, #tpu.memory_space<vmem>>, vector<16x128xbf16>
    tpu.vector_store %arg4[%c0_3, %c0_4], %3 {strides = array<i32>} : memref<16x128xbf16, #tpu.memory_space<vmem>>, vector<16x128xbf16>,
    return
  }
  func.func @transform_0(%arg0: i32, %arg1: i32) -> (i32, i32) {
    %c0_i32 = arith.constant 0 : i32
    %c0_i32_0 = arith.constant 0 : i32
    return %arg0, %c0_i32 : i32, i32
  }
  func.func @transform_1(%arg0: i32, %arg1: i32) -> (i32, i32) {
    %c0_i32 = arith.constant 0 : i32
    %c0_i32_0 = arith.constant 0 : i32
    return %c0_i32, %arg1 : i32, i32
  }
  func.func @transform_2(%arg0: i32, %arg1: i32) -> (i32, i32) {
    %c0_i32 = arith.constant 0 : i32
    return %arg0, %arg1 : i32, i32
  }
}

</mosaic_0001>

<llo_original>
// kernel: tpu_custom_call.1
$region0: #{tpu_custom_call.1}
  #allocation0 [shape = 'u32[]', space=smem, size = 0x4, offset = 0x4, fixed_abs, tag = 'smem constant byte address 0x4 - core index']
  #allocation1 [shape = 'u32[144,128]{1,0:T(1,128)}', space=vmem, size = 0x12000, scoped, tag = 'internal scratch']
  %s0 = inlined_call_operand.hbm [shape: bf16[16,64], index: 0, kind: input, shape index: {}]
  %s1 = inlined_call_operand.hbm [shape: bf16[64,128], index: 1, kind: input, shape index: {}]
  %s2 = inlined_call_operand.hbm [shape: bf16[16,128], index: 2, kind: output, shape index: {}]
  %s3 = sld [smem:[#allocation0]]
  $region26: #{tpu_custom_call.1} parent=0
    _
  %s5 = ssub.s32 1, %s3
  %s6 = scalar_select 0, %s5, %s3
  $region1: #{tpu_custom_call.1} parent=0
    #allocation2 [shape = 'u8[4096]{0}', space=vmem, size = 0x1000, scoped, tag = 'input window, operand 0, single buffered']
    #allocation3 [shape = 's32[1]{0}', space=sflag, size = 0x4, scoped, tag = 'scoped memory for tpu_custom_call.1']
    #allocation4 [shape = 's32[1]{0}', space=sflag, size = 0x4, scoped, tag = 'scoped memory for tpu_custom_call.1']
    #allocation5 [shape = 'u8[16384]{0}', space=vmem, size = 0x4000, scoped, tag = 'input window, operand 1, single buffered']
    #allocation6 [shape = 's32[1]{0}', space=sflag, size = 0x4, scoped, tag = 'scoped memory for tpu_custom_call.1']
    #allocation7 [shape = 'u8[4096]{0}', space=vmem, size = 0x1000, scoped, tag = 'output window, operand 0, single buffered']
    %7 = vsyncpa [#allocation3], 0
    %8 = vsyncpa [#allocation6], 0
    %9 = vsyncpa [#allocation4], 0
    // Predicated region
    $region2: #{tpu_custom_call.1} parent=1 // pred_check
      _
    $region3: #{tpu_custom_call.1} parent=1 // pred_check_branch
      %11 = sbr.rel (0) target = $region5
    $region4: #{tpu_custom_call.1} parent=1 // pred_region
      %s13 = ssub.s32 128, 128
      %14 = vsyncadd [#allocation3], %s13
      %s15 = sshll.u32 [#allocation2], 4
      %s16 = int_to_ptr.vmem [resolvable:$true] %s15
      %21 = dma.hbm_to_vmem [thread:$0]  %s0, 128, %s16, [#allocation3], 64, 64, 4
    $region5: #{tpu_custom_call.1} parent=1 // pred_fallthru
      _
    // Predicated region
    $region6: #{tpu_custom_call.1} parent=1 // pred_check
      _
    $region7: #{tpu_custom_call.1} parent=1 // pred_check_branch
      %23 = sbr.rel (0) target = $region9
    $region8: #{tpu_custom_call.1} parent=1 // pred_region
      %s25 = ssub.s32 512, 512
      %26 = vsyncadd [#allocation6], %s25
      %s27 = sshll.u32 [#allocation5], 4
      %s28 = int_to_ptr.vmem [resolvable:$true] %s27
      %33 = dma.hbm_to_vmem [thread:$0]  %s1, 512, %s28, [#allocation6], 64, 64, 4
    $region9: #{tpu_custom_call.1} parent=1 // pred_fallthru
      _
    // Predicated region
    $region10: #{tpu_custom_call.1} parent=1 // pred_check
      _
    $region11: #{tpu_custom_call.1} parent=1 // pred_check_branch
      %35 = sbr.rel (0) target = $region13
    $region12: #{tpu_custom_call.1} parent=1 // pred_region
      %36 = dma.done [#allocation3], 128
    $region13: #{tpu_custom_call.1} parent=1 // pred_fallthru
      _
    // Predicated region
    $region14: #{tpu_custom_call.1} parent=1 // pred_check
      _
    $region15: #{tpu_custom_call.1} parent=1 // pred_check_branch
      %38 = sbr.rel (0) target = $region17
    $region16: #{tpu_custom_call.1} parent=1 // pred_region
      %39 = dma.done [#allocation6], 512
    $region17: #{tpu_custom_call.1} parent=1 // pred_fallthru
      _
    %v41 = vld [vmem:[#allocation2] sm:$0xf]
    %v42 = vld [vmem:[#allocation2 + $0x4] sm:$0xf]
    %v43 = vld [vmem:[#allocation5] sm:$0xf]
    %v44 = vld [vmem:[#allocation5 + $0x4] sm:$0xf]
    %v45 = vld [vmem:[#allocation5 + $0x8] sm:$0xf]
    %v46 = vld [vmem:[#allocation5 + $0xc] sm:$0xf]
    %v47 = vld [vmem:[#allocation5 + $0x10] sm:$0xf]
    %v48 = vld [vmem:[#allocation5 + $0x14] sm:$0xf]
    %v49 = vld [vmem:[#allocation5 + $0x18] sm:$0xf]
    %v50 = vld [vmem:[#allocation5 + $0x1c] sm:$0xf]
    %v53 = vunpack.c.l.b16 %v41
    %v54 = vunpack.c.l.b16 %v42
    %v55 = vpack.c.b16 %v54, %v53
    %v64 = vunpack.c.l.b16 %v43
    %v65 = vunpack.c.l.b16 %v44
    %v66 = vunpack.c.l.b16 %v45
    %v67 = vunpack.c.l.b16 %v46
    %v68 = vunpack.c.l.b16 %v47
    %v69 = vunpack.c.l.b16 %v48
    %v70 = vunpack.c.l.b16 %v49
    %v71 = vunpack.c.l.b16 %v50
    %v72 = vpack.c.b16 %v65, %v64
    %v73 = vpack.c.b16 %v67, %v66
    %v74 = vpack.c.b16 %v69, %v68
    %v75 = vpack.c.b16 %v71, %v70
    %vm80 = vcmask 523264
    %v82 = vsel %vm80, %v55, 0
    %84 = vmatprep.subr.bf16.mxu0 0
    %85 = vmatpush1.bf16.msra.mxu0 0
    %86 = vmatprep.subr.bf16.mxu0 0
    %87 = vmatpush1.bf16.msra.mxu0 0
    %88 = vmatprep.subr.bf16.mxu0 0
    %89 = vmatpush1.bf16.msra.mxu0 0
    %90 = vmatprep.subr.bf16.mxu0 0
    %91 = vmatpush1.bf16.msra.mxu0 0
    %92 = vmatprep.subr.bf16.mxu0 0
    %93 = vmatpush1.bf16.msra.mxu0 %v75
    %94 = vmatprep.subr.bf16.mxu0 0
    %95 = vmatpush1.bf16.msra.mxu0 %v74
    %96 = vmatprep.subr.bf16.mxu0 0
    %97 = vmatpush1.bf16.msra.mxu0 %v73
    %98 = vmatprep.subr.bf16.mxu0 0
    %99 = vmatpush1.bf16.msra.mxu0 %v72
    %100 = vmatprep.subr.bf16.mxu0 0
    %101 = vmatpush2.bf16.msra.mxu0 0
    %102 = vmatprep.subr.bf16.mxu0 0
    %103 = vmatpush2.bf16.msra.mxu0 0
    %104 = vmatprep.subr.bf16.mxu0 0
    %105 = vmatpush2.bf16.msra.mxu0 0
    %106 = vmatprep.subr.bf16.mxu0 0
    %107 = vmatpush2.bf16.msra.mxu0 0
    %108 = vmatprep.subr.bf16.mxu0 0
    %109 = vmatpush2.bf16.msra.mxu0 0
    %110 = vmatprep.subr.bf16.mxu0 0
    %111 = vmatpush2.bf16.msra.mxu0 0
    %112 = vmatprep.subr.bf16.mxu0 0
    %113 = vmatpush2.bf16.msra.mxu0 0
    %114 = vmatprep.subr.bf16.mxu0 0
    %115 = vmatpush2.bf16.msra.mxu0 0
    %116 = vmatprep.mubr.bf16.mxu0 0
    %117 = vmatmul.mubr.bf16.gmra.mxu0 %v82
    %v118 = vpop.f32.mrf.mxu0
    %v119 = vadd.f32 0.0, %v118
    %v120 = vpop.f32.mrf.mxu0
    %v121 = vpop.f32.mrf.mxu0
    %v122 = vadd.f32 0.0, %v121
    %v123 = vpop.f32.mrf.mxu0
    %124 = vdwg.mxu0
    %v125 = vpack.c.bf16 %v122, %v119
    %v127 = vunpack.c.l.b16 %v125
    %v128 = vunpack.c.h.b16 %v125
    %v129 = vpack.c.b16 %v127, %v127
    %v130 = vpack.c.b16 %v128, %v128
    %133 = vst [vmem:[#allocation7] sm:$0xf] %v129
    %134 = vst [vmem:[#allocation7 + $0x4] sm:$0xf] %v130
    // Predicated region
    $region18: #{tpu_custom_call.1} parent=1 // pred_check
      _
    $region19: #{tpu_custom_call.1} parent=1 // pred_check_branch
      %136 = sbr.rel (0) target = $region21
    $region20: #{tpu_custom_call.1} parent=1 // pred_region
      %s138 = ssub.s32 128, 128
      %139 = vsyncadd [#allocation4], %s138
      %s140 = sshll.u32 [#allocation7], 4
      %s141 = int_to_ptr.vmem [resolvable:$true] %s140
      %146 = dma.vmem_to_hbm [thread:$0]  %s141, 128, %s2, [#allocation4], 64, 64, 4
    $region21: #{tpu_custom_call.1} parent=1 // pred_fallthru
      _
    // Predicated region
    $region22: #{tpu_custom_call.1} parent=1 // pred_check
      _
    $region23: #{tpu_custom_call.1} parent=1 // pred_check_branch
      %148 = sbr.rel (0) target = $region25
    $region24: #{tpu_custom_call.1} parent=1 // pred_region
      %149 = dma.done [#allocation4], 128
    $region25: #{tpu_custom_call.1} parent=1 // pred_fallthru
      _
    %150 = vsyncpa [#allocation3], 1
    %151 = vsyncpa [#allocation6], 1
    %152 = vsyncpa [#allocation4], 1

</llo_original>
